<compile_context>
chip_gen: v6e
topology: v6e:2x2x1
jax: 0.10.0
libtpu: 0.0.40
codegen_flags: <defaults>
</compile_context>

<pallas_src>
import jax
import jax.numpy as jnp
from jax.experimental import pallas as pl
from jax.experimental.pallas import tpu as pltpu


def se_gate_conv1x1_kernel(g_ref, w_ref, x_ref, o_ref):
    # g_ref: (1, Cin)      SE gate logits (pre-sigmoid), f32
    # w_ref: (Cout, Cin)   1x1 conv weight, f32
    # x_ref: (Cin, HW)     activations, native NCHW layout (N=1), f32
    # o_ref: (Cout, HW)    output, f32
    gate = jax.nn.sigmoid(g_ref[...])                        # (1, Cin), EUP
    # Fold the gate into the small weight operand (VPU work on 144x864 instead
    # of materializing a gated copy of the 864x196 activation slab).
    w_gated = (w_ref[...] * gate).astype(jnp.bfloat16)       # (Cout, Cin)
    x_bf = x_ref[...].astype(jnp.bfloat16)                   # (Cin, HW)
    o_ref[...] = jnp.dot(
        w_gated, x_bf, preferred_element_type=jnp.float32
    ).astype(o_ref.dtype)


def sigmoid_mul_conv1x1(x_nchw, gate_nc11, weight_oihw):
    """x_nchw: (1, Cin, H, W); gate_nc11: (1, Cin, 1, 1); weight: (Cout, Cin, 1, 1)."""
    N, Cin, H, W = x_nchw.shape
    Cout = weight_oihw.shape[0]
    assert N == 1, "kernel assumes batch 1 (as in the reference module)"
    HW = H * W

    # Free (contiguous) reshapes — no transposes.
    x_mat = x_nchw.reshape(Cin, HW)          # (864, 196)
    g_flat = gate_nc11.reshape(1, Cin)       # (1, 864)
    w_mat = weight_oihw.reshape(Cout, Cin)   # (144, 864)

    # Accurate cost hint so XLA overlaps surrounding HLO with this tiny call.
    cost = pl.CostEstimate(
        flops=2 * Cout * Cin * HW,
        transcendentals=Cin,
        bytes_accessed=4 * (Cin * HW + Cout * Cin + Cin + Cout * HW),
    )

    # Single block / single (trivial) grid step: the op is DMA/launch-latency
    # bound, so any tiling only adds per-step overhead.  All block shapes match
    # the full array extents, so (8,128) alignment constraints are satisfied.
    out_mat = pl.pallas_call(
        se_gate_conv1x1_kernel,
        out_shape=jax.ShapeDtypeStruct((Cout, HW), x_nchw.dtype),
        grid=(1,),
        in_specs=[
            pl.BlockSpec((1, Cin), lambda i: (0, 0)),        # gate logits
            pl.BlockSpec((Cout, Cin), lambda i: (0, 0)),     # weight
            pl.BlockSpec((Cin, HW), lambda i: (0, 0)),       # activations
        ],
        out_specs=pl.BlockSpec((Cout, HW), lambda i: (0, 0)),
        cost_estimate=cost,
        compiler_params=pltpu.CompilerParams(
            dimension_semantics=("arbitrary",),
        ),
    )(g_flat, w_mat, x_mat)

    # (Cout, H*W) -> (1, Cout, H, W): contiguous reshape, no transpose.
    return out_mat.reshape(N, Cout, H, W)


if __name__ == "__main__":
    key = jax.random.PRNGKey(0)
    k1, k2, k3 = jax.random.split(key, 3)

    # Shapes implied by the module's forward pass.
    N, Cin, H, W = 1, 864, 14, 14
    Cout = 144

    x299 = jax.random.normal(k1, (N, Cin, H, W), dtype=jnp.float32)
    x303 = jax.random.normal(k2, (1, Cin, 1, 1), dtype=jnp.float32)
    # Deterministic conv weight init (Conv2d(864, 144, 1, bias=False)).
    weight = jax.random.normal(k3, (Cout, Cin, 1, 1), dtype=jnp.float32) * 0.02

    out = sigmoid_mul_conv1x1(x299, x303, weight)
    jax.block_until_ready(out)

    # Pure-JAX f32 reference of the fused SE-gate + 1x1 conv.
    gated = x299 * jax.nn.sigmoid(x303)
    ref = jnp.einsum("nchw,oc->nohw", gated, weight.reshape(Cout, Cin))
    assert out.shape == (N, Cout, H, W)
    # Tolerance accounts for the bf16 operand cast (f32 accumulation).
    assert jnp.allclose(out, ref, atol=2e-2, rtol=2e-2)

    print("KERNEL_OK")
</pallas_src>

<mosaic_0001>
module attributes {stable_mosaic.version = 11 : i64} {
  func.func @se_gate_conv1x1_kernel(%arg0: i32, %arg1: memref<1x864xf32, #tpu.memory_space<vmem>>, %arg2: memref<144x864xf32, #tpu.memory_space<vmem>>, %arg3: memref<864x196xf32, #tpu.memory_space<vmem>>, %arg4: memref<144x196xf32, #tpu.memory_space<vmem>>) attributes {dimension_semantics = [#tpu.dimension_semantics<arbitrary>], iteration_bounds = array<i64: 1>, scalar_prefetch = 0 : i64, scratch_operands = 0 : i64, tpu.core_type = #tpu.core_type<tc>, window_params = [{pipeline_mode = #tpu.pipeline_mode<synchronous>, transform_indices = @transform_0, window_bounds = array<i64: 1, 864>}, {pipeline_mode = #tpu.pipeline_mode<synchronous>, transform_indices = @transform_1, window_bounds = array<i64: 144, 864>}, {pipeline_mode = #tpu.pipeline_mode<synchronous>, transform_indices = @transform_2, window_bounds = array<i64: 864, 196>}, {pipeline_mode = #tpu.pipeline_mode<synchronous>, transform_indices = @transform_3, window_bounds = array<i64: 144, 196>}]} {
    %c0 = arith.constant 0 : index
    %c0_0 = arith.constant 0 : index
    %0 = vector.load %arg1[%c0, %c0_0] : memref<1x864xf32, #tpu.memory_space<vmem>>, vector<1x864xf32>
    %1 = arith.negf %0 : vector<1x864xf32>
    %2 = math.exp %1 : vector<1x864xf32>
    %cst = arith.constant 1.000000e+00 : f32
    %3 = vector.broadcast %cst : f32 to vector<1x864xf32>
    %4 = arith.addf %3, %2 : vector<1x864xf32>
    %5 = arith.divf %3, %4 : vector<1x864xf32>
    %c0_1 = arith.constant 0 : index
    %c0_2 = arith.constant 0 : index
    %6 = vector.load %arg2[%c0_1, %c0_2] : memref<144x864xf32, #tpu.memory_space<vmem>>, vector<144x864xf32>
    %7 = vector.broadcast %5 : vector<1x864xf32> to vector<144x864xf32>
    %8 = arith.mulf %6, %7 : vector<144x864xf32>
    %9 = arith.truncf %8 : vector<144x864xf32> to vector<144x864xbf16>
    %c0_3 = arith.constant 0 : index
    %c0_4 = arith.constant 0 : index
    %10 = vector.load %arg3[%c0_3, %c0_4] : memref<864x196xf32, #tpu.memory_space<vmem>>, vector<864x196xf32>
    %11 = arith.truncf %10 : vector<864x196xf32> to vector<864x196xbf16>
    %cst_5 = arith.constant dense<0.000000e+00> : vector<144x196xf32>
    %12 = tpu.matmul %9, %11, %cst_5 {dimension_numbers = #tpu.dot_dimension_numbers<[1], [0], [0], [1], [0, 0, 1, 1], [], []>} : vector<144x864xbf16>, vector<864x196xbf16>, vector<144x196xf32> -> vector<144x196xf32>
    %c0_6 = arith.constant 0 : index
    %c0_7 = arith.constant 0 : index
    %13 = vector.load %arg4[%c0_6, %c0_7] : memref<144x196xf32, #tpu.memory_space<vmem>>, vector<144x196xf32>
    tpu.vector_store %arg4[%c0_6, %c0_7], %12 {strides = array<i32>} : memref<144x196xf32, #tpu.memory_space<vmem>>, vector<144x196xf32>,
    return
  }
  func.func @transform_0(%arg0: i32) -> (i32, i32) {
    %c0_i32 = arith.constant 0 : i32
    %c0_i32_0 = arith.constant 0 : i32
    %c0_i32_1 = arith.constant 0 : i32
    return %c0_i32, %c0_i32_0 : i32, i32
  }
  func.func @transform_1(%arg0: i32) -> (i32, i32) {
    %c0_i32 = arith.constant 0 : i32
    %c0_i32_0 = arith.constant 0 : i32
    %c0_i32_1 = arith.constant 0 : i32
    return %c0_i32, %c0_i32_0 : i32, i32
  }
  func.func @transform_2(%arg0: i32) -> (i32, i32) {
    %c0_i32 = arith.constant 0 : i32
    %c0_i32_0 = arith.constant 0 : i32
    %c0_i32_1 = arith.constant 0 : i32
    return %c0_i32, %c0_i32_0 : i32, i32
  }
  func.func @transform_3(%arg0: i32) -> (i32, i32) {
    %c0_i32 = arith.constant 0 : i32
    %c0_i32_0 = arith.constant 0 : i32
    %c0_i32_1 = arith.constant 0 : i32
    return %c0_i32, %c0_i32_0 : i32, i32
  }
}

</mosaic_0001>

<llo_original>
// kernel: tpu_custom_call.1
$region0: #{tpu_custom_call.1}
  #allocation0 [shape = 'u32[]', space=smem, size = 0x4, offset = 0x4, fixed_abs, tag = 'smem constant byte address 0x4 - core index']
  #allocation1 [shape = 'u32[144,128]{1,0:T(1,128)}', space=vmem, size = 0x12000, scoped, tag = 'internal scratch']
  %s0 = inlined_call_operand.vmem [shape: f32[1,864], index: 0, kind: input, shape index: {}]
  %s1 = inlined_call_operand.vmem [shape: f32[144,864], index: 1, kind: input, shape index: {}]
  %s2 = inlined_call_operand.vmem [shape: f32[864,196], index: 2, kind: input, shape index: {}]
  %s3 = inlined_call_operand.hbm [shape: f32[144,196], index: 3, kind: output, shape index: {}]
  %s4 = sld [smem:[#allocation0]]
  $region22: #{tpu_custom_call.1} parent=0
    _
  %s6 = ssub.s32 1, %s4
  %s7 = scalar_select 0, %s6, %s4
  $region1: #{tpu_custom_call.1} parent=0
    #allocation2 [shape = 'u8[147456]{0}', space=vmem, size = 0x24000, scoped, tag = 'output window, operand 0, single buffered']
    #allocation3 [shape = 's32[1]{0}', space=sflag, size = 0x4, scoped, tag = 'scoped memory for tpu_custom_call.1']
    %8 = vsyncpa [#allocation3], 0
    // Predicated region
    $region2: #{tpu_custom_call.1} parent=1 // pred_check
      _
    $region3: #{tpu_custom_call.1} parent=1 // pred_check_branch
      %10 = sbr.rel (0) target = $region5
    $region4: #{tpu_custom_call.1} parent=1 // pred_region
      _
    $region5: #{tpu_custom_call.1} parent=1 // pred_fallthru
      _
    // Predicated region
    $region6: #{tpu_custom_call.1} parent=1 // pred_check
      _
    $region7: #{tpu_custom_call.1} parent=1 // pred_check_branch
      %12 = sbr.rel (0) target = $region9
    $region8: #{tpu_custom_call.1} parent=1 // pred_region
      _
    $region9: #{tpu_custom_call.1} parent=1 // pred_fallthru
      _
    // Predicated region
    $region10: #{tpu_custom_call.1} parent=1 // pred_check
      _
    $region11: #{tpu_custom_call.1} parent=1 // pred_check_branch
      %14 = sbr.rel (0) target = $region13
    $region12: #{tpu_custom_call.1} parent=1 // pred_region
      _
    $region13: #{tpu_custom_call.1} parent=1 // pred_fallthru
      _
    %v16 = vld [vmem:[%s0] sm:$0x7f]
    %v17 = vxor.u32 %v16, 2147483648
    %v18 = vmul.f32 %v17, 1.442695
    %v19 = vpow.pop %v18
    %v20 = vadd.f32 %v19, 1.0
    %v21 = vrcp.pop %v20
    %v22 = vmul.f32 1.0, %v21
    %v23 = vld [vmem:[%s1] sm:$0xff]
    %v24 = vld [vmem:[%s1 + $0x8] sm:$0xff]
    %v25 = vld [vmem:[%s1 + $0x10] sm:$0xff]
    %v26 = vld [vmem:[%s1 + $0x18] sm:$0xff]
    %v27 = vld [vmem:[%s1 + $0x20] sm:$0xff]
    %v28 = vld [vmem:[%s1 + $0x28] sm:$0xff]
    %v29 = vld [vmem:[%s1 + $0x30] sm:$0xff]
    %v30 = vld [vmem:[%s1 + $0x38] sm:$0xff]
    %v31 = vld [vmem:[%s1 + $0x40] sm:$0xff]
    %v32 = vld [vmem:[%s1 + $0x48] sm:$0xff]
    %v33 = vld [vmem:[%s1 + $0x50] sm:$0xff]
    %v34 = vld [vmem:[%s1 + $0x58] sm:$0xff]
    %v35 = vld [vmem:[%s1 + $0x60] sm:$0xff]
    %v36 = vld [vmem:[%s1 + $0x68] sm:$0xff]
    %v37 = vld [vmem:[%s1 + $0x70] sm:$0xff]
    %v38 = vld [vmem:[%s1 + $0x78] sm:$0xff]
    %v39 = vld [vmem:[%s1 + $0x80] sm:$0xff]
    %v40 = vld [vmem:[%s1 + $0x88] sm:$0xff]
    %v41 = vld [vmem:[%s1 + $0x90] sm:$0xff]
    %v42 = vld [vmem:[%s1 + $0x98] sm:$0xff]
    %v43 = vld [vmem:[%s1 + $0xa0] sm:$0xff]
    %v44 = vld [vmem:[%s1 + $0xa8] sm:$0xff]
    %v45 = vld [vmem:[%s1 + $0xb0] sm:$0xff]
    %v46 = vld [vmem:[%s1 + $0xb8] sm:$0xff]
    %v47 = vld [vmem:[%s1 + $0xc0] sm:$0xff]
    %v48 = vld [vmem:[%s1 + $0xc8] sm:$0xff]
    %v49 = vld [vmem:[%s1 + $0xd0] sm:$0xff]
    %v50 = vld [vmem:[%s1 + $0xd8] sm:$0xff]
    %v51 = vld [vmem:[%s1 + $0xe0] sm:$0xff]
    %v52 = vld [vmem:[%s1 + $0xe8] sm:$0xff]
    %v53 = vld [vmem:[%s1 + $0xf0] sm:$0xff]
    %v54 = vld [vmem:[%s1 + $0xf8] sm:$0xff]
    %v55 = vld [vmem:[%s1 + $0x100] sm:$0xff]
    %v56 = vld [vmem:[%s1 + $0x108] sm:$0xff]
    %v57 = vld [vmem:[%s1 + $0x110] sm:$0xff]
    %v58 = vld [vmem:[%s1 + $0x118] sm:$0xff]
    %v59 = vld [vmem:[%s1 + $0x120] sm:$0xff]
    %v60 = vld [vmem:[%s1 + $0x128] sm:$0xff]
    %v61 = vld [vmem:[%s1 + $0x130] sm:$0xff]
    %v62 = vld [vmem:[%s1 + $0x138] sm:$0xff]
    %v63 = vld [vmem:[%s1 + $0x140] sm:$0xff]
    %v64 = vld [vmem:[%s1 + $0x148] sm:$0xff]
    %v65 = vld [vmem:[%s1 + $0x150] sm:$0xff]
    %v66 = vld [vmem:[%s1 + $0x158] sm:$0xff]
    %v67 = vld [vmem:[%s1 + $0x160] sm:$0xff]
    %v68 = vld [vmem:[%s1 + $0x168] sm:$0xff]
    %v69 = vld [vmem:[%s1 + $0x170] sm:$0xff]
    %v70 = vld [vmem:[%s1 + $0x178] sm:$0xff]
    %v71 = vld [vmem:[%s1 + $0x180] sm:$0xff]
    %v72 = vld [vmem:[%s1 + $0x188] sm:$0xff]
    %v73 = vld [vmem:[%s1 + $0x190] sm:$0xff]
    %v74 = vld [vmem:[%s1 + $0x198] sm:$0xff]
    %v75 = vld [vmem:[%s1 + $0x1a0] sm:$0xff]
    %v76 = vld [vmem:[%s1 + $0x1a8] sm:$0xff]
    %v77 = vld [vmem:[%s1 + $0x1b0] sm:$0xff]
    %v78 = vld [vmem:[%s1 + $0x1b8] sm:$0xff]
    %v79 = vld [vmem:[%s1 + $0x1c0] sm:$0xff]
    %v80 = vld [vmem:[%s1 + $0x1c8] sm:$0xff]
    %v81 = vld [vmem:[%s1 + $0x1d0] sm:$0xff]
    %v82 = vld [vmem:[%s1 + $0x1d8] sm:$0xff]
    %v83 = vld [vmem:[%s1 + $0x1e0] sm:$0xff]
    %v84 = vld [vmem:[%s1 + $0x1e8] sm:$0xff]
    %v85 = vld [vmem:[%s1 + $0x1f0] sm:$0xff]
    %v86 = vld [vmem:[%s1 + $0x1f8] sm:$0xff]
    %v87 = vld [vmem:[%s1 + $0x200] sm:$0xff]
    %v88 = vld [vmem:[%s1 + $0x208] sm:$0xff]
    %v89 = vld [vmem:[%s1 + $0x210] sm:$0xff]
    %v90 = vld [vmem:[%s1 + $0x218] sm:$0xff]
    %v91 = vld [vmem:[%s1 + $0x220] sm:$0xff]
    %v92 = vld [vmem:[%s1 + $0x228] sm:$0xff]
    %v93 = vld [vmem:[%s1 + $0x230] sm:$0xff]
    %v94 = vld [vmem:[%s1 + $0x238] sm:$0xff]
    %v95 = vld [vmem:[%s1 + $0x240] sm:$0xff]
    %v96 = vld [vmem:[%s1 + $0x248] sm:$0xff]
    %v97 = vld [vmem:[%s1 + $0x250] sm:$0xff]
    %v98 = vld [vmem:[%s1 + $0x258] sm:$0xff]
    %v99 = vld [vmem:[%s1 + $0x260] sm:$0xff]
    %v100 = vld [vmem:[%s1 + $0x268] sm:$0xff]
    %v101 = vld [vmem:[%s1 + $0x270] sm:$0xff]
    %v102 = vld [vmem:[%s1 + $0x278] sm:$0xff]
    %v103 = vld [vmem:[%s1 + $0x280] sm:$0xff]
    %v104 = vld [vmem:[%s1 + $0x288] sm:$0xff]
    %v105 = vld [vmem:[%s1 + $0x290] sm:$0xff]
    %v106 = vld [vmem:[%s1 + $0x298] sm:$0xff]
    %v107 = vld [vmem:[%s1 + $0x2a0] sm:$0xff]
    %v108 = vld [vmem:[%s1 + $0x2a8] sm:$0xff]
    %v109 = vld [vmem:[%s1 + $0x2b0] sm:$0xff]
    %v110 = vld [vmem:[%s1 + $0x2b8] sm:$0xff]
    %v111 = vld [vmem:[%s1 + $0x2c0] sm:$0xff]
    %v112 = vld [vmem:[%s1 + $0x2c8] sm:$0xff]
    %v113 = vld [vmem:[%s1 + $0x2d0] sm:$0xff]
    %v114 = vld [vmem:[%s1 + $0x2d8] sm:$0xff]
    %v115 = vld [vmem:[%s1 + $0x2e0] sm:$0xff]
    %v116 = vld [vmem:[%s1 + $0x2e8] sm:$0xff]
    %v117 = vld [vmem:[%s1 + $0x2f0] sm:$0xff]
    %v118 = vld [vmem:[%s1 + $0x2f8] sm:$0xff]
    %v119 = vld [vmem:[%s1 + $0x300] sm:$0xff]
    %v120 = vld [vmem:[%s1 + $0x308] sm:$0xff]
    %v121 = vld [vmem:[%s1 + $0x310] sm:$0xff]
    %v122 = vld [vmem:[%s1 + $0x318] sm:$0xff]
    %v123 = vld [vmem:[%s1 + $0x320] sm:$0xff]
    %v124 = vld [vmem:[%s1 + $0x328] sm:$0xff]
    %v125 = vld [vmem:[%s1 + $0x330] sm:$0xff]
    %v126 = vld [vmem:[%s1 + $0x338] sm:$0xff]
    %v127 = vld [vmem:[%s1 + $0x340] sm:$0xff]
    %v128 = vld [vmem:[%s1 + $0x348] sm:$0xff]
    %v129 = vld [vmem:[%s1 + $0x350] sm:$0xff]
    %v130 = vld [vmem:[%s1 + $0x358] sm:$0xff]
    %v131 = vld [vmem:[%s1 + $0x360] sm:$0xff]
    %v132 = vld [vmem:[%s1 + $0x368] sm:$0xff]
    %v133 = vld [vmem:[%s1 + $0x370] sm:$0xff]
    %v134 = vld [vmem:[%s1 + $0x378] sm:$0xff]
    %v135 = vld [vmem:[%s1 + $0x380] sm:$0xff]
    %v136 = vld [vmem:[%s1 + $0x388] sm:$0xff]
    %v137 = vld [vmem:[%s1 + $0x390] sm:$0xff]
    %v138 = vld [vmem:[%s1 + $0x398] sm:$0xff]
    %v139 = vld [vmem:[%s1 + $0x3a0] sm:$0xff]
    %v140 = vld [vmem:[%s1 + $0x3a8] sm:$0xff]
    %v141 = vld [vmem:[%s1 + $0x3b0] sm:$0xff]
    %v142 = vld [vmem:[%s1 + $0x3b8] sm:$0xff]
    %v143 = vld [vmem:[%s1 + $0x3c0] sm:$0xff]
    %v144 = vld [vmem:[%s1 + $0x3c8] sm:$0xff]
    %v145 = vld [vmem:[%s1 + $0x3d0] sm:$0xff]
    %v146 = vld [vmem:[%s1 + $0x3d8] sm:$0xff]
    %v147 = vld [vmem:[%s1 + $0x3e0] sm:$0xff]
    %v148 = vld [vmem:[%s1 + $0x3e8] sm:$0xff]
    %v150 = vlaneseq
    %v151 = vshrl.u32 %v150, 7
    %v152 = vsub.s32 0, %v151
    %v153 = vrot.slane %v22, %v152
    %v154 = vlaneseq
    %v155 = vshrl.u32 %v154, 7
    %v156 = vsub.s32 1, %v155
    %v157 = vrot.slane %v22, %v156
    %v158 = vlaneseq
    %v159 = vshrl.u32 %v158, 7
    %v160 = vsub.s32 2, %v159
    %v161 = vrot.slane %v22, %v160
    %v162 = vlaneseq
    %v163 = vshrl.u32 %v162, 7
    %v164 = vsub.s32 3, %v163
    %v165 = vrot.slane %v22, %v164
    %v166 = vlaneseq
    %v167 = vshrl.u32 %v166, 7
    %v168 = vsub.s32 4, %v167
    %v169 = vrot.slane %v22, %v168
    %v170 = vlaneseq
    %v171 = vshrl.u32 %v170, 7
    %v172 = vsub.s32 5, %v171
    %v173 = vrot.slane %v22, %v172
    %v174 = vlaneseq
    %v175 = vshrl.u32 %v174, 7
    %v176 = vsub.s32 6, %v175
    %v177 = vrot.slane %v22, %v176
    %v185 = vmul.f32 %v23, %v153
    %v186 = vmul.f32 %v24, %v157
    %v187 = vmul.f32 %v25, %v161
    %v188 = vmul.f32 %v26, %v165
    %v189 = vmul.f32 %v27, %v169
    %v190 = vmul.f32 %v28, %v173
    %v191 = vmul.f32 %v29, %v177
    %v192 = vmul.f32 %v30, %v153
    %v193 = vmul.f32 %v31, %v157
    %v194 = vmul.f32 %v32, %v161
    %v195 = vmul.f32 %v33, %v165
    %v196 = vmul.f32 %v34, %v169
    %v197 = vmul.f32 %v35, %v173
    %v198 = vmul.f32 %v36, %v177
    %v199 = vmul.f32 %v37, %v153
    %v200 = vmul.f32 %v38, %v157
    %v201 = vmul.f32 %v39, %v161
    %v202 = vmul.f32 %v40, %v165
    %v203 = vmul.f32 %v41, %v169
    %v204 = vmul.f32 %v42, %v173
    %v205 = vmul.f32 %v43, %v177
    %v206 = vmul.f32 %v44, %v153
    %v207 = vmul.f32 %v45, %v157
    %v208 = vmul.f32 %v46, %v161
    %v209 = vmul.f32 %v47, %v165
    %v210 = vmul.f32 %v48, %v169
    %v211 = vmul.f32 %v49, %v173
    %v212 = vmul.f32 %v50, %v177
    %v213 = vmul.f32 %v51, %v153
    %v214 = vmul.f32 %v52, %v157
    %v215 = vmul.f32 %v53, %v161
    %v216 = vmul.f32 %v54, %v165
    %v217 = vmul.f32 %v55, %v169
    %v218 = vmul.f32 %v56, %v173
    %v219 = vmul.f32 %v57, %v177
    %v220 = vmul.f32 %v58, %v153
    %v221 = vmul.f32 %v59, %v157
    %v222 = vmul.f32 %v60, %v161
    %v223 = vmul.f32 %v61, %v165
    %v224 = vmul.f32 %v62, %v169
    %v225 = vmul.f32 %v63, %v173
    %v226 = vmul.f32 %v64, %v177
    %v227 = vmul.f32 %v65, %v153
    %v228 = vmul.f32 %v66, %v157
    %v229 = vmul.f32 %v67, %v161
    %v230 = vmul.f32 %v68, %v165
    %v231 = vmul.f32 %v69, %v169
    %v232 = vmul.f32 %v70, %v173
    %v233 = vmul.f32 %v71, %v177
    %v234 = vmul.f32 %v72, %v153
    %v235 = vmul.f32 %v73, %v157
    %v236 = vmul.f32 %v74, %v161
    %v237 = vmul.f32 %v75, %v165
    %v238 = vmul.f32 %v76, %v169
    %v239 = vmul.f32 %v77, %v173
    %v240 = vmul.f32 %v78, %v177
    %v241 = vmul.f32 %v79, %v153
    %v242 = vmul.f32 %v80, %v157
    %v243 = vmul.f32 %v81, %v161
    %v244 = vmul.f32 %v82, %v165
    %v245 = vmul.f32 %v83, %v169
    %v246 = vmul.f32 %v84, %v173
    %v247 = vmul.f32 %v85, %v177
    %v248 = vmul.f32 %v86, %v153
    %v249 = vmul.f32 %v87, %v157
    %v250 = vmul.f32 %v88, %v161
    %v251 = vmul.f32 %v89, %v165
    %v252 = vmul.f32 %v90, %v169
    %v253 = vmul.f32 %v91, %v173
    %v254 = vmul.f32 %v92, %v177
    %v255 = vmul.f32 %v93, %v153
    %v256 = vmul.f32 %v94, %v157
    %v257 = vmul.f32 %v95, %v161
    %v258 = vmul.f32 %v96, %v165
    %v259 = vmul.f32 %v97, %v169
    %v260 = vmul.f32 %v98, %v173
    %v261 = vmul.f32 %v99, %v177
    %v262 = vmul.f32 %v100, %v153
    %v263 = vmul.f32 %v101, %v157
    %v264 = vmul.f32 %v102, %v161
    %v265 = vmul.f32 %v103, %v165
    %v266 = vmul.f32 %v104, %v169
    %v267 = vmul.f32 %v105, %v173
    %v268 = vmul.f32 %v106, %v177
    %v269 = vmul.f32 %v107, %v153
    %v270 = vmul.f32 %v108, %v157
    %v271 = vmul.f32 %v109, %v161
    %v272 = vmul.f32 %v110, %v165
    %v273 = vmul.f32 %v111, %v169
    %v274 = vmul.f32 %v112, %v173
    %v275 = vmul.f32 %v113, %v177
    %v276 = vmul.f32 %v114, %v153
    %v277 = vmul.f32 %v115, %v157
    %v278 = vmul.f32 %v116, %v161
    %v279 = vmul.f32 %v117, %v165
    %v280 = vmul.f32 %v118, %v169
    %v281 = vmul.f32 %v119, %v173
    %v282 = vmul.f32 %v120, %v177
    %v283 = vmul.f32 %v121, %v153
    %v284 = vmul.f32 %v122, %v157
    %v285 = vmul.f32 %v123, %v161
    %v286 = vmul.f32 %v124, %v165
    %v287 = vmul.f32 %v125, %v169
    %v288 = vmul.f32 %v126, %v173
    %v289 = vmul.f32 %v127, %v177
    %v290 = vmul.f32 %v128, %v153
    %v291 = vmul.f32 %v129, %v157
    %v292 = vmul.f32 %v130, %v161
    %v293 = vmul.f32 %v131, %v165
    %v294 = vmul.f32 %v132, %v169
    %v295 = vmul.f32 %v133, %v173
    %v296 = vmul.f32 %v134, %v177
    %v297 = vmul.f32 %v135, %v153
    %v298 = vmul.f32 %v136, %v157
    %v299 = vmul.f32 %v137, %v161
    %v300 = vmul.f32 %v138, %v165
    %v301 = vmul.f32 %v139, %v169
    %v302 = vmul.f32 %v140, %v173
    %v303 = vmul.f32 %v141, %v177
    %v304 = vmul.f32 %v142, %v153
    %v305 = vmul.f32 %v143, %v157
    %v306 = vmul.f32 %v144, %v161
    %v307 = vmul.f32 %v145, %v165
    %v308 = vmul.f32 %v146, %v169
    %v309 = vmul.f32 %v147, %v173
    %v310 = vmul.f32 %v148, %v177
    %v311 = vpack.c.bf16 %v192, %v185
    %v312 = vpack.c.bf16 %v193, %v186
    %v313 = vpack.c.bf16 %v194, %v187
    %v314 = vpack.c.bf16 %v195, %v188
    %v315 = vpack.c.bf16 %v196, %v189
    %v316 = vpack.c.bf16 %v197, %v190
    %v317 = vpack.c.bf16 %v198, %v191
    %v318 = vpack.c.bf16 %v206, %v199
    %v319 = vpack.c.bf16 %v207, %v200
    %v320 = vpack.c.bf16 %v208, %v201
    %v321 = vpack.c.bf16 %v209, %v202
    %v322 = vpack.c.bf16 %v210, %v203
    %v323 = vpack.c.bf16 %v211, %v204
    %v324 = vpack.c.bf16 %v212, %v205
    %v325 = vpack.c.bf16 %v220, %v213
    %v326 = vpack.c.bf16 %v221, %v214
    %v327 = vpack.c.bf16 %v222, %v215
    %v328 = vpack.c.bf16 %v223, %v216
    %v329 = vpack.c.bf16 %v224, %v217
    %v330 = vpack.c.bf16 %v225, %v218
    %v331 = vpack.c.bf16 %v226, %v219
    %v332 = vpack.c.bf16 %v234, %v227
    %v333 = vpack.c.bf16 %v235, %v228
    %v334 = vpack.c.bf16 %v236, %v229
    %v335 = vpack.c.bf16 %v237, %v230
    %v336 = vpack.c.bf16 %v238, %v231
    %v337 = vpack.c.bf16 %v239, %v232
    %v338 = vpack.c.bf16 %v240, %v233
    %v339 = vpack.c.bf16 %v248, %v241
    %v340 = vpack.c.bf16 %v249, %v242
    %v341 = vpack.c.bf16 %v250, %v243
    %v342 = vpack.c.bf16 %v251, %v244
    %v343 = vpack.c.bf16 %v252, %v245
    %v344 = vpack.c.bf16 %v253, %v246
    %v345 = vpack.c.bf16 %v254, %v247
    %v346 = vpack.c.bf16 %v262, %v255
    %v347 = vpack.c.bf16 %v263, %v256
    %v348 = vpack.c.bf16 %v264, %v257
    %v349 = vpack.c.bf16 %v265, %v258
    %v350 = vpack.c.bf16 %v266, %v259
    %v351 = vpack.c.bf16 %v267, %v260
    %v352 = vpack.c.bf16 %v268, %v261
    %v353 = vpack.c.bf16 %v276, %v269
    %v354 = vpack.c.bf16 %v277, %v270
    %v355 = vpack.c.bf16 %v278, %v271
    %v356 = vpack.c.bf16 %v279, %v272
    %v357 = vpack.c.bf16 %v280, %v273
    %v358 = vpack.c.bf16 %v281, %v274
    %v359 = vpack.c.bf16 %v282, %v275
    %v360 = vpack.c.bf16 %v290, %v283
    %v361 = vpack.c.bf16 %v291, %v284
    %v362 = vpack.c.bf16 %v292, %v285
    %v363 = vpack.c.bf16 %v293, %v286
    %v364 = vpack.c.bf16 %v294, %v287
    %v365 = vpack.c.bf16 %v295, %v288
    %v366 = vpack.c.bf16 %v296, %v289
    %v367 = vpack.c.bf16 %v304, %v297
    %v368 = vpack.c.bf16 %v305, %v298
    %v369 = vpack.c.bf16 %v306, %v299
    %v370 = vpack.c.bf16 %v307, %v300
    %v371 = vpack.c.bf16 %v308, %v301
    %v372 = vpack.c.bf16 %v309, %v302
    %v373 = vpack.c.bf16 %v310, %v303
    %v374 = vld [vmem:[%s2] sm:$0xff]
    %v375 = vld [vmem:[%s2 + $0x8] sm:$0xff]
    %v376 = vld [vmem:[%s2 + $0x10] sm:$0xff]
    %v377 = vld [vmem:[%s2 + $0x18] sm:$0xff]
    %v378 = vld [vmem:[%s2 + $0x20] sm:$0xff]
    %v379 = vld [vmem:[%s2 + $0x28] sm:$0xff]
    %v380 = vld [vmem:[%s2 + $0x30] sm:$0xff]
    %v381 = vld [vmem:[%s2 + $0x38] sm:$0xff]
    %v382 = vld [vmem:[%s2 + $0x40] sm:$0xff]
    %v383 = vld [vmem:[%s2 + $0x48] sm:$0xff]
    %v384 = vld [vmem:[%s2 + $0x50] sm:$0xff]
    %v385 = vld [vmem:[%s2 + $0x58] sm:$0xff]
    %v386 = vld [vmem:[%s2 + $0x60] sm:$0xff]
    %v387 = vld [vmem:[%s2 + $0x68] sm:$0xff]
    %v388 = vld [vmem:[%s2 + $0x70] sm:$0xff]
    %v389 = vld [vmem:[%s2 + $0x78] sm:$0xff]
    %v390 = vld [vmem:[%s2 + $0x80] sm:$0xff]
    %v391 = vld [vmem:[%s2 + $0x88] sm:$0xff]
    %v392 = vld [vmem:[%s2 + $0x90] sm:$0xff]
    %v393 = vld [vmem:[%s2 + $0x98] sm:$0xff]
    %v394 = vld [vmem:[%s2 + $0xa0] sm:$0xff]
    %v395 = vld [vmem:[%s2 + $0xa8] sm:$0xff]
    %v396 = vld [vmem:[%s2 + $0xb0] sm:$0xff]
    %v397 = vld [vmem:[%s2 + $0xb8] sm:$0xff]
    %v398 = vld [vmem:[%s2 + $0xc0] sm:$0xff]
    %v399 = vld [vmem:[%s2 + $0xc8] sm:$0xff]
    %v400 = vld [vmem:[%s2 + $0xd0] sm:$0xff]
    %v401 = vld [vmem:[%s2 + $0xd8] sm:$0xff]
    %v402 = vld [vmem:[%s2 + $0xe0] sm:$0xff]
    %v403 = vld [vmem:[%s2 + $0xe8] sm:$0xff]
    %v404 = vld [vmem:[%s2 + $0xf0] sm:$0xff]
    %v405 = vld [vmem:[%s2 + $0xf8] sm:$0xff]
    %v406 = vld [vmem:[%s2 + $0x100] sm:$0xff]
    %v407 = vld [vmem:[%s2 + $0x108] sm:$0xff]
    %v408 = vld [vmem:[%s2 + $0x110] sm:$0xff]
    %v409 = vld [vmem:[%s2 + $0x118] sm:$0xff]
    %v410 = vld [vmem:[%s2 + $0x120] sm:$0xff]
    %v411 = vld [vmem:[%s2 + $0x128] sm:$0xff]
    %v412 = vld [vmem:[%s2 + $0x130] sm:$0xff]
    %v413 = vld [vmem:[%s2 + $0x138] sm:$0xff]
    %v414 = vld [vmem:[%s2 + $0x140] sm:$0xff]
    %v415 = vld [vmem:[%s2 + $0x148] sm:$0xff]
    %v416 = vld [vmem:[%s2 + $0x150] sm:$0xff]
    %v417 = vld [vmem:[%s2 + $0x158] sm:$0xff]
    %v418 = vld [vmem:[%s2 + $0x160] sm:$0xff]
    %v419 = vld [vmem:[%s2 + $0x168] sm:$0xff]
    %v420 = vld [vmem:[%s2 + $0x170] sm:$0xff]
    %v421 = vld [vmem:[%s2 + $0x178] sm:$0xff]
    %v422 = vld [vmem:[%s2 + $0x180] sm:$0xff]
    %v423 = vld [vmem:[%s2 + $0x188] sm:$0xff]
    %v424 = vld [vmem:[%s2 + $0x190] sm:$0xff]
    %v425 = vld [vmem:[%s2 + $0x198] sm:$0xff]
    %v426 = vld [vmem:[%s2 + $0x1a0] sm:$0xff]
    %v427 = vld [vmem:[%s2 + $0x1a8] sm:$0xff]
    %v428 = vld [vmem:[%s2 + $0x1b0] sm:$0xff]
    %v429 = vld [vmem:[%s2 + $0x1b8] sm:$0xff]
    %v430 = vld [vmem:[%s2 + $0x1c0] sm:$0xff]
    %v431 = vld [vmem:[%s2 + $0x1c8] sm:$0xff]
    %v432 = vld [vmem:[%s2 + $0x1d0] sm:$0xff]
    %v433 = vld [vmem:[%s2 + $0x1d8] sm:$0xff]
    %v434 = vld [vmem:[%s2 + $0x1e0] sm:$0xff]
    %v435 = vld [vmem:[%s2 + $0x1e8] sm:$0xff]
    %v436 = vld [vmem:[%s2 + $0x1f0] sm:$0xff]
    %v437 = vld [vmem:[%s2 + $0x1f8] sm:$0xff]
    %v438 = vld [vmem:[%s2 + $0x200] sm:$0xff]
    %v439 = vld [vmem:[%s2 + $0x208] sm:$0xff]
    %v440 = vld [vmem:[%s2 + $0x210] sm:$0xff]
    %v441 = vld [vmem:[%s2 + $0x218] sm:$0xff]
    %v442 = vld [vmem:[%s2 + $0x220] sm:$0xff]
    %v443 = vld [vmem:[%s2 + $0x228] sm:$0xff]
    %v444 = vld [vmem:[%s2 + $0x230] sm:$0xff]
    %v445 = vld [vmem:[%s2 + $0x238] sm:$0xff]
    %v446 = vld [vmem:[%s2 + $0x240] sm:$0xff]
    %v447 = vld [vmem:[%s2 + $0x248] sm:$0xff]
    %v448 = vld [vmem:[%s2 + $0x250] sm:$0xff]
    %v449 = vld [vmem:[%s2 + $0x258] sm:$0xff]
    %v450 = vld [vmem:[%s2 + $0x260] sm:$0xff]
    %v451 = vld [vmem:[%s2 + $0x268] sm:$0xff]
    %v452 = vld [vmem:[%s2 + $0x270] sm:$0xff]
    %v453 = vld [vmem:[%s2 + $0x278] sm:$0xff]
    %v454 = vld [vmem:[%s2 + $0x280] sm:$0xff]
    %v455 = vld [vmem:[%s2 + $0x288] sm:$0xff]
    %v456 = vld [vmem:[%s2 + $0x290] sm:$0xff]
    %v457 = vld [vmem:[%s2 + $0x298] sm:$0xff]
    %v458 = vld [vmem:[%s2 + $0x2a0] sm:$0xff]
    %v459 = vld [vmem:[%s2 + $0x2a8] sm:$0xff]
    %v460 = vld [vmem:[%s2 + $0x2b0] sm:$0xff]
    %v461 = vld [vmem:[%s2 + $0x2b8] sm:$0xff]
    %v462 = vld [vmem:[%s2 + $0x2c0] sm:$0xff]
    %v463 = vld [vmem:[%s2 + $0x2c8] sm:$0xff]
    %v464 = vld [vmem:[%s2 + $0x2d0] sm:$0xff]
    %v465 = vld [vmem:[%s2 + $0x2d8] sm:$0xff]
    %v466 = vld [vmem:[%s2 + $0x2e0] sm:$0xff]
    %v467 = vld [vmem:[%s2 + $0x2e8] sm:$0xff]
    %v468 = vld [vmem:[%s2 + $0x2f0] sm:$0xff]
    %v469 = vld [vmem:[%s2 + $0x2f8] sm:$0xff]
    %v470 = vld [vmem:[%s2 + $0x300] sm:$0xff]
    %v471 = vld [vmem:[%s2 + $0x308] sm:$0xff]
    %v472 = vld [vmem:[%s2 + $0x310] sm:$0xff]
    %v473 = vld [vmem:[%s2 + $0x318] sm:$0xff]
    %v474 = vld [vmem:[%s2 + $0x320] sm:$0xff]
    %v475 = vld [vmem:[%s2 + $0x328] sm:$0xff]
    %v476 = vld [vmem:[%s2 + $0x330] sm:$0xff]
    %v477 = vld [vmem:[%s2 + $0x338] sm:$0xff]
    %v478 = vld [vmem:[%s2 + $0x340] sm:$0xff]
    %v479 = vld [vmem:[%s2 + $0x348] sm:$0xff]
    %v480 = vld [vmem:[%s2 + $0x350] sm:$0xff]
    %v481 = vld [vmem:[%s2 + $0x358] sm:$0xff]
    %v482 = vld [vmem:[%s2 + $0x360] sm:$0xff]
    %v483 = vld [vmem:[%s2 + $0x368] sm:$0xff]
    %v484 = vld [vmem:[%s2 + $0x370] sm:$0xff]
    %v485 = vld [vmem:[%s2 + $0x378] sm:$0xff]
    %v486 = vld [vmem:[%s2 + $0x380] sm:$0xff]
    %v487 = vld [vmem:[%s2 + $0x388] sm:$0xff]
    %v488 = vld [vmem:[%s2 + $0x390] sm:$0xff]
    %v489 = vld [vmem:[%s2 + $0x398] sm:$0xff]
    %v490 = vld [vmem:[%s2 + $0x3a0] sm:$0xff]
    %v491 = vld [vmem:[%s2 + $0x3a8] sm:$0xff]
    %v492 = vld [vmem:[%s2 + $0x3b0] sm:$0xff]
    %v493 = vld [vmem:[%s2 + $0x3b8] sm:$0xff]
    %v494 = vld [vmem:[%s2 + $0x3c0] sm:$0xff]
    %v495 = vld [vmem:[%s2 + $0x3c8] sm:$0xff]
    %v496 = vld [vmem:[%s2 + $0x3d0] sm:$0xff]
    %v497 = vld [vmem:[%s2 + $0x3d8] sm:$0xff]
    %v498 = vld [vmem:[%s2 + $0x3e0] sm:$0xff]
    %v499 = vld [vmem:[%s2 + $0x3e8] sm:$0xff]
    %v500 = vld [vmem:[%s2 + $0x3f0] sm:$0xff]
    %v501 = vld [vmem:[%s2 + $0x3f8] sm:$0xff]
    %v502 = vld [vmem:[%s2 + $0x400] sm:$0xff]
    %v503 = vld [vmem:[%s2 + $0x408] sm:$0xff]
    %v504 = vld [vmem:[%s2 + $0x410] sm:$0xff]
    %v505 = vld [vmem:[%s2 + $0x418] sm:$0xff]
    %v506 = vld [vmem:[%s2 + $0x420] sm:$0xff]
    %v507 = vld [vmem:[%s2 + $0x428] sm:$0xff]
    %v508 = vld [vmem:[%s2 + $0x430] sm:$0xff]
    %v509 = vld [vmem:[%s2 + $0x438] sm:$0xff]
    %v510 = vld [vmem:[%s2 + $0x440] sm:$0xff]
    %v511 = vld [vmem:[%s2 + $0x448] sm:$0xff]
    %v512 = vld [vmem:[%s2 + $0x450] sm:$0xff]
    %v513 = vld [vmem:[%s2 + $0x458] sm:$0xff]
    %v514 = vld [vmem:[%s2 + $0x460] sm:$0xff]
    %v515 = vld [vmem:[%s2 + $0x468] sm:$0xff]
    %v516 = vld [vmem:[%s2 + $0x470] sm:$0xff]
    %v517 = vld [vmem:[%s2 + $0x478] sm:$0xff]
    %v518 = vld [vmem:[%s2 + $0x480] sm:$0xff]
    %v519 = vld [vmem:[%s2 + $0x488] sm:$0xff]
    %v520 = vld [vmem:[%s2 + $0x490] sm:$0xff]
    %v521 = vld [vmem:[%s2 + $0x498] sm:$0xff]
    %v522 = vld [vmem:[%s2 + $0x4a0] sm:$0xff]
    %v523 = vld [vmem:[%s2 + $0x4a8] sm:$0xff]
    %v524 = vld [vmem:[%s2 + $0x4b0] sm:$0xff]
    %v525 = vld [vmem:[%s2 + $0x4b8] sm:$0xff]
    %v526 = vld [vmem:[%s2 + $0x4c0] sm:$0xff]
    %v527 = vld [vmem:[%s2 + $0x4c8] sm:$0xff]
    %v528 = vld [vmem:[%s2 + $0x4d0] sm:$0xff]
    %v529 = vld [vmem:[%s2 + $0x4d8] sm:$0xff]
    %v530 = vld [vmem:[%s2 + $0x4e0] sm:$0xff]
    %v531 = vld [vmem:[%s2 + $0x4e8] sm:$0xff]
    %v532 = vld [vmem:[%s2 + $0x4f0] sm:$0xff]
    %v533 = vld [vmem:[%s2 + $0x4f8] sm:$0xff]
    %v534 = vld [vmem:[%s2 + $0x500] sm:$0xff]
    %v535 = vld [vmem:[%s2 + $0x508] sm:$0xff]
    %v536 = vld [vmem:[%s2 + $0x510] sm:$0xff]
    %v537 = vld [vmem:[%s2 + $0x518] sm:$0xff]
    %v538 = vld [vmem:[%s2 + $0x520] sm:$0xff]
    %v539 = vld [vmem:[%s2 + $0x528] sm:$0xff]
    %v540 = vld [vmem:[%s2 + $0x530] sm:$0xff]
    %v541 = vld [vmem:[%s2 + $0x538] sm:$0xff]
    %v542 = vld [vmem:[%s2 + $0x540] sm:$0xff]
    %v543 = vld [vmem:[%s2 + $0x548] sm:$0xff]
    %v544 = vld [vmem:[%s2 + $0x550] sm:$0xff]
    %v545 = vld [vmem:[%s2 + $0x558] sm:$0xff]
    %v546 = vld [vmem:[%s2 + $0x560] sm:$0xff]
    %v547 = vld [vmem:[%s2 + $0x568] sm:$0xff]
    %v548 = vld [vmem:[%s2 + $0x570] sm:$0xff]
    %v549 = vld [vmem:[%s2 + $0x578] sm:$0xff]
    %v550 = vld [vmem:[%s2 + $0x580] sm:$0xff]
    %v551 = vld [vmem:[%s2 + $0x588] sm:$0xff]
    %v552 = vld [vmem:[%s2 + $0x590] sm:$0xff]
    %v553 = vld [vmem:[%s2 + $0x598] sm:$0xff]
    %v554 = vld [vmem:[%s2 + $0x5a0] sm:$0xff]
    %v555 = vld [vmem:[%s2 + $0x5a8] sm:$0xff]
    %v556 = vld [vmem:[%s2 + $0x5b0] sm:$0xff]
    %v557 = vld [vmem:[%s2 + $0x5b8] sm:$0xff]
    %v558 = vld [vmem:[%s2 + $0x5c0] sm:$0xff]
    %v559 = vld [vmem:[%s2 + $0x5c8] sm:$0xff]
    %v560 = vld [vmem:[%s2 + $0x5d0] sm:$0xff]
    %v561 = vld [vmem:[%s2 + $0x5d8] sm:$0xff]
    %v562 = vld [vmem:[%s2 + $0x5e0] sm:$0xff]
    %v563 = vld [vmem:[%s2 + $0x5e8] sm:$0xff]
    %v564 = vld [vmem:[%s2 + $0x5f0] sm:$0xff]
    %v565 = vld [vmem:[%s2 + $0x5f8] sm:$0xff]
    %v566 = vld [vmem:[%s2 + $0x600] sm:$0xff]
    %v567 = vld [vmem:[%s2 + $0x608] sm:$0xff]
    %v568 = vld [vmem:[%s2 + $0x610] sm:$0xff]
    %v569 = vld [vmem:[%s2 + $0x618] sm:$0xff]
    %v570 = vld [vmem:[%s2 + $0x620] sm:$0xff]
    %v571 = vld [vmem:[%s2 + $0x628] sm:$0xff]
    %v572 = vld [vmem:[%s2 + $0x630] sm:$0xff]
    %v573 = vld [vmem:[%s2 + $0x638] sm:$0xff]
    %v574 = vld [vmem:[%s2 + $0x640] sm:$0xff]
    %v575 = vld [vmem:[%s2 + $0x648] sm:$0xff]
    %v576 = vld [vmem:[%s2 + $0x650] sm:$0xff]
    %v577 = vld [vmem:[%s2 + $0x658] sm:$0xff]
    %v578 = vld [vmem:[%s2 + $0x660] sm:$0xff]
    %v579 = vld [vmem:[%s2 + $0x668] sm:$0xff]
    %v580 = vld [vmem:[%s2 + $0x670] sm:$0xff]
    %v581 = vld [vmem:[%s2 + $0x678] sm:$0xff]
    %v582 = vld [vmem:[%s2 + $0x680] sm:$0xff]
    %v583 = vld [vmem:[%s2 + $0x688] sm:$0xff]
    %v584 = vld [vmem:[%s2 + $0x690] sm:$0xff]
    %v585 = vld [vmem:[%s2 + $0x698] sm:$0xff]
    %v586 = vld [vmem:[%s2 + $0x6a0] sm:$0xff]
    %v587 = vld [vmem:[%s2 + $0x6a8] sm:$0xff]
    %v588 = vld [vmem:[%s2 + $0x6b0] sm:$0xff]
    %v589 = vld [vmem:[%s2 + $0x6b8] sm:$0xff]
    %v590 = vpack.c.bf16 %v376, %v374
    %v591 = vpack.c.bf16 %v377, %v375
    %v592 = vpack.c.bf16 %v380, %v378
    %v593 = vpack.c.bf16 %v381, %v379
    %v594 = vpack.c.bf16 %v384, %v382
    %v595 = vpack.c.bf16 %v385, %v383
    %v596 = vpack.c.bf16 %v388, %v386
    %v597 = vpack.c.bf16 %v389, %v387
    %v598 = vpack.c.bf16 %v392, %v390
    %v599 = vpack.c.bf16 %v393, %v391
    %v600 = vpack.c.bf16 %v396, %v394
    %v601 = vpack.c.bf16 %v397, %v395
    %v602 = vpack.c.bf16 %v400, %v398
    %v603 = vpack.c.bf16 %v401, %v399
    %v604 = vpack.c.bf16 %v404, %v402
    %v605 = vpack.c.bf16 %v405, %v403
    %v606 = vpack.c.bf16 %v408, %v406
    %v607 = vpack.c.bf16 %v409, %v407
    %v608 = vpack.c.bf16 %v412, %v410
    %v609 = vpack.c.bf16 %v413, %v411
    %v610 = vpack.c.bf16 %v416, %v414
    %v611 = vpack.c.bf16 %v417, %v415
    %v612 = vpack.c.bf16 %v420, %v418
    %v613 = vpack.c.bf16 %v421, %v419
    %v614 = vpack.c.bf16 %v424, %v422
    %v615 = vpack.c.bf16 %v425, %v423
    %v616 = vpack.c.bf16 %v428, %v426
    %v617 = vpack.c.bf16 %v429, %v427
    %v618 = vpack.c.bf16 %v432, %v430
    %v619 = vpack.c.bf16 %v433, %v431
    %v620 = vpack.c.bf16 %v436, %v434
    %v621 = vpack.c.bf16 %v437, %v435
    %v622 = vpack.c.bf16 %v440, %v438
    %v623 = vpack.c.bf16 %v441, %v439
    %v624 = vpack.c.bf16 %v444, %v442
    %v625 = vpack.c.bf16 %v445, %v443
    %v626 = vpack.c.bf16 %v448, %v446
    %v627 = vpack.c.bf16 %v449, %v447
    %v628 = vpack.c.bf16 %v452, %v450
    %v629 = vpack.c.bf16 %v453, %v451
    %v630 = vpack.c.bf16 %v456, %v454
    %v631 = vpack.c.bf16 %v457, %v455
    %v632 = vpack.c.bf16 %v460, %v458
    %v633 = vpack.c.bf16 %v461, %v459
    %v634 = vpack.c.bf16 %v464, %v462
    %v635 = vpack.c.bf16 %v465, %v463
    %v636 = vpack.c.bf16 %v468, %v466
    %v637 = vpack.c.bf16 %v469, %v467
    %v638 = vpack.c.bf16 %v472, %v470
    %v639 = vpack.c.bf16 %v473, %v471
    %v640 = vpack.c.bf16 %v476, %v474
    %v641 = vpack.c.bf16 %v477, %v475
    %v642 = vpack.c.bf16 %v480, %v478
    %v643 = vpack.c.bf16 %v481, %v479
    %v644 = vpack.c.bf16 %v484, %v482
    %v645 = vpack.c.bf16 %v485, %v483
    %v646 = vpack.c.bf16 %v488, %v486
    %v647 = vpack.c.bf16 %v489, %v487
    %v648 = vpack.c.bf16 %v492, %v490
    %v649 = vpack.c.bf16 %v493, %v491
    %v650 = vpack.c.bf16 %v496, %v494
    %v651 = vpack.c.bf16 %v497, %v495
    %v652 = vpack.c.bf16 %v500, %v498
    %v653 = vpack.c.bf16 %v501, %v499
    %v654 = vpack.c.bf16 %v504, %v502
    %v655 = vpack.c.bf16 %v505, %v503
    %v656 = vpack.c.bf16 %v508, %v506
    %v657 = vpack.c.bf16 %v509, %v507
    %v658 = vpack.c.bf16 %v512, %v510
    %v659 = vpack.c.bf16 %v513, %v511
    %v660 = vpack.c.bf16 %v516, %v514
    %v661 = vpack.c.bf16 %v517, %v515
    %v662 = vpack.c.bf16 %v520, %v518
    %v663 = vpack.c.bf16 %v521, %v519
    %v664 = vpack.c.bf16 %v524, %v522
    %v665 = vpack.c.bf16 %v525, %v523
    %v666 = vpack.c.bf16 %v528, %v526
    %v667 = vpack.c.bf16 %v529, %v527
    %v668 = vpack.c.bf16 %v532, %v530
    %v669 = vpack.c.bf16 %v533, %v531
    %v670 = vpack.c.bf16 %v536, %v534
    %v671 = vpack.c.bf16 %v537, %v535
    %v672 = vpack.c.bf16 %v540, %v538
    %v673 = vpack.c.bf16 %v541, %v539
    %v674 = vpack.c.bf16 %v544, %v542
    %v675 = vpack.c.bf16 %v545, %v543
    %v676 = vpack.c.bf16 %v548, %v546
    %v677 = vpack.c.bf16 %v549, %v547
    %v678 = vpack.c.bf16 %v552, %v550
    %v679 = vpack.c.bf16 %v553, %v551
    %v680 = vpack.c.bf16 %v556, %v554
    %v681 = vpack.c.bf16 %v557, %v555
    %v682 = vpack.c.bf16 %v560, %v558
    %v683 = vpack.c.bf16 %v561, %v559
    %v684 = vpack.c.bf16 %v564, %v562
    %v685 = vpack.c.bf16 %v565, %v563
    %v686 = vpack.c.bf16 %v568, %v566
    %v687 = vpack.c.bf16 %v569, %v567
    %v688 = vpack.c.bf16 %v572, %v570
    %v689 = vpack.c.bf16 %v573, %v571
    %v690 = vpack.c.bf16 %v576, %v574
    %v691 = vpack.c.bf16 %v577, %v575
    %v692 = vpack.c.bf16 %v580, %v578
    %v693 = vpack.c.bf16 %v581, %v579
    %v694 = vpack.c.bf16 %v584, %v582
    %v695 = vpack.c.bf16 %v585, %v583
    %v696 = vpack.c.bf16 %v588, %v586
    %v697 = vpack.c.bf16 %v589, %v587
    %vm698 = vcmask 785408
    %v700 = vsel %vm698, %v317, 0
    %v703 = vsel %vm698, %v324, 0
    %v706 = vsel %vm698, %v331, 0
    %v709 = vsel %vm698, %v338, 0
    %v712 = vsel %vm698, %v345, 0
    %v715 = vsel %vm698, %v352, 0
    %v718 = vsel %vm698, %v359, 0
    %v721 = vsel %vm698, %v366, 0
    %v724 = vsel %vm698, %v373, 0
    %726 = vmatprep.subr.bf16.mxu0 %v605
    %727 = vmatpush1.bf16.msra.mxu0 %v604
    %728 = vmatprep.subr.bf16.mxu0 %v603
    %729 = vmatpush1.bf16.msra.mxu0 %v602
    %730 = vmatprep.subr.bf16.mxu0 %v601
    %731 = vmatpush1.bf16.msra.mxu0 %v600
    %732 = vmatprep.subr.bf16.mxu0 %v599
    %733 = vmatpush1.bf16.msra.mxu0 %v598
    %734 = vmatprep.subr.bf16.mxu0 %v597
    %735 = vmatpush1.bf16.msra.mxu0 %v596
    %736 = vmatprep.subr.bf16.mxu0 %v595
    %737 = vmatpush1.bf16.msra.mxu0 %v594
    %738 = vmatprep.subr.bf16.mxu0 %v593
    %739 = vmatpush1.bf16.msra.mxu0 %v592
    %740 = vmatprep.subr.bf16.mxu0 %v591
    %741 = vmatpush1.bf16.msra.mxu0 %v590
    %742 = vmatprep.subr.bf16.mxu0 %v621
    %743 = vmatpush2.bf16.msra.mxu0 %v620
    %744 = vmatprep.subr.bf16.mxu0 %v619
    %745 = vmatpush2.bf16.msra.mxu0 %v618
    %746 = vmatprep.subr.bf16.mxu0 %v617
    %747 = vmatpush2.bf16.msra.mxu0 %v616
    %748 = vmatprep.subr.bf16.mxu0 %v615
    %749 = vmatpush2.bf16.msra.mxu0 %v614
    %750 = vmatprep.subr.bf16.mxu0 %v613
    %751 = vmatpush2.bf16.msra.mxu0 %v612
    %752 = vmatprep.subr.bf16.mxu0 %v611
    %753 = vmatpush2.bf16.msra.mxu0 %v610
    %754 = vmatprep.subr.bf16.mxu0 %v609
    %755 = vmatpush2.bf16.msra.mxu0 %v608
    %756 = vmatprep.subr.bf16.mxu0 %v607
    %757 = vmatpush2.bf16.msra.mxu0 %v606
    %758 = vmatprep.mubr.bf16.mxu0 %v312
    %759 = vmatmul.mubr.bf16.gmra.mxu0 %v311
    %v760 = vpop.f32.mrf.mxu0
    %v761 = vadd.f32 0.0, %v760
    %v762 = vpop.f32.mrf.mxu0
    %v763 = vadd.f32 0.0, %v762
    %v764 = vpop.f32.mrf.mxu0
    %v765 = vadd.f32 0.0, %v764
    %v766 = vpop.f32.mrf.mxu0
    %v767 = vadd.f32 0.0, %v766
    %768 = vmatprep.mubr.bf16.mxu0 %v319
    %769 = vmatmul.mubr.bf16.gmra.mxu0 %v318
    %v770 = vpop.f32.mrf.mxu0
    %v771 = vadd.f32 0.0, %v770
    %v772 = vpop.f32.mrf.mxu0
    %v773 = vadd.f32 0.0, %v772
    %v774 = vpop.f32.mrf.mxu0
    %v775 = vadd.f32 0.0, %v774
    %v776 = vpop.f32.mrf.mxu0
    %v777 = vadd.f32 0.0, %v776
    %778 = vmatprep.mubr.bf16.mxu0 %v326
    %779 = vmatmul.mubr.bf16.gmra.mxu0 %v325
    %v780 = vpop.f32.mrf.mxu0
    %v781 = vadd.f32 0.0, %v780
    %v782 = vpop.f32.mrf.mxu0
    %v783 = vadd.f32 0.0, %v782
    %v784 = vpop.f32.mrf.mxu0
    %v785 = vadd.f32 0.0, %v784
    %v786 = vpop.f32.mrf.mxu0
    %v787 = vadd.f32 0.0, %v786
    %788 = vmatprep.mubr.bf16.mxu0 %v333
    %789 = vmatmul.mubr.bf16.gmra.mxu0 %v332
    %v790 = vpop.f32.mrf.mxu0
    %v791 = vadd.f32 0.0, %v790
    %v792 = vpop.f32.mrf.mxu0
    %v793 = vadd.f32 0.0, %v792
    %v794 = vpop.f32.mrf.mxu0
    %v795 = vadd.f32 0.0, %v794
    %v796 = vpop.f32.mrf.mxu0
    %v797 = vadd.f32 0.0, %v796
    %798 = vmatprep.mubr.bf16.mxu0 %v340
    %799 = vmatmul.mubr.bf16.gmra.mxu0 %v339
    %v800 = vpop.f32.mrf.mxu0
    %v801 = vadd.f32 0.0, %v800
    %v802 = vpop.f32.mrf.mxu0
    %v803 = vadd.f32 0.0, %v802
    %v804 = vpop.f32.mrf.mxu0
    %v805 = vadd.f32 0.0, %v804
    %v806 = vpop.f32.mrf.mxu0
    %v807 = vadd.f32 0.0, %v806
    %808 = vmatprep.mubr.bf16.mxu0 %v347
    %809 = vmatmul.mubr.bf16.gmra.mxu0 %v346
    %v810 = vpop.f32.mrf.mxu0
    %v811 = vadd.f32 0.0, %v810
    %v812 = vpop.f32.mrf.mxu0
    %v813 = vadd.f32 0.0, %v812
    %v814 = vpop.f32.mrf.mxu0
    %v815 = vadd.f32 0.0, %v814
    %v816 = vpop.f32.mrf.mxu0
    %v817 = vadd.f32 0.0, %v816
    %818 = vmatprep.mubr.bf16.mxu0 %v354
    %819 = vmatmul.mubr.bf16.gmra.mxu0 %v353
    %v820 = vpop.f32.mrf.mxu0
    %v821 = vadd.f32 0.0, %v820
    %v822 = vpop.f32.mrf.mxu0
    %v823 = vadd.f32 0.0, %v822
    %v824 = vpop.f32.mrf.mxu0
    %v825 = vadd.f32 0.0, %v824
    %v826 = vpop.f32.mrf.mxu0
    %v827 = vadd.f32 0.0, %v826
    %828 = vmatprep.mubr.bf16.mxu0 %v361
    %829 = vmatmul.mubr.bf16.gmra.mxu0 %v360
    %v830 = vpop.f32.mrf.mxu0
    %v831 = vadd.f32 0.0, %v830
    %v832 = vpop.f32.mrf.mxu0
    %v833 = vadd.f32 0.0, %v832
    %v834 = vpop.f32.mrf.mxu0
    %v835 = vadd.f32 0.0, %v834
    %v836 = vpop.f32.mrf.mxu0
    %v837 = vadd.f32 0.0, %v836
    %838 = vmatprep.mubr.bf16.mxu0 %v368
    %839 = vmatmul.mubr.bf16.gmra.mxu0 %v367
    %v840 = vpop.f32.mrf.mxu0
    %v841 = vadd.f32 0.0, %v840
    %v842 = vpop.f32.mrf.mxu0
    %v843 = vadd.f32 0.0, %v842
    %v844 = vpop.f32.mrf.mxu0
    %v845 = vadd.f32 0.0, %v844
    %v846 = vpop.f32.mrf.mxu0
    %v847 = vadd.f32 0.0, %v846
    %848 = vdwg.mxu0
    %849 = vmatprep.subr.bf16.mxu0 %v637
    %850 = vmatpush1.bf16.msra.mxu0 %v636
    %851 = vmatprep.subr.bf16.mxu0 %v635
    %852 = vmatpush1.bf16.msra.mxu0 %v634
    %853 = vmatprep.subr.bf16.mxu0 %v633
    %854 = vmatpush1.bf16.msra.mxu0 %v632
    %855 = vmatprep.subr.bf16.mxu0 %v631
    %856 = vmatpush1.bf16.msra.mxu0 %v630
    %857 = vmatprep.subr.bf16.mxu0 %v629
    %858 = vmatpush1.bf16.msra.mxu0 %v628
    %859 = vmatprep.subr.bf16.mxu0 %v627
    %860 = vmatpush1.bf16.msra.mxu0 %v626
    %861 = vmatprep.subr.bf16.mxu0 %v625
    %862 = vmatpush1.bf16.msra.mxu0 %v624
    %863 = vmatprep.subr.bf16.mxu0 %v623
    %864 = vmatpush1.bf16.msra.mxu0 %v622
    %865 = vmatprep.subr.bf16.mxu0 %v653
    %866 = vmatpush2.bf16.msra.mxu0 %v652
    %867 = vmatprep.subr.bf16.mxu0 %v651
    %868 = vmatpush2.bf16.msra.mxu0 %v650
    %869 = vmatprep.subr.bf16.mxu0 %v649
    %870 = vmatpush2.bf16.msra.mxu0 %v648
    %871 = vmatprep.subr.bf16.mxu0 %v647
    %872 = vmatpush2.bf16.msra.mxu0 %v646
    %873 = vmatprep.subr.bf16.mxu0 %v645
    %874 = vmatpush2.bf16.msra.mxu0 %v644
    %875 = vmatprep.subr.bf16.mxu0 %v643
    %876 = vmatpush2.bf16.msra.mxu0 %v642
    %877 = vmatprep.subr.bf16.mxu0 %v641
    %878 = vmatpush2.bf16.msra.mxu0 %v640
    %879 = vmatprep.subr.bf16.mxu0 %v639
    %880 = vmatpush2.bf16.msra.mxu0 %v638
    %881 = vmatprep.mubr.bf16.mxu0 %v314
    %882 = vmatmul.mubr.bf16.gmra.mxu0 %v313
    %v883 = vpop.f32.mrf.mxu0
    %v884 = vadd.f32 %v761, %v883
    %v885 = vpop.f32.mrf.mxu0
    %v886 = vadd.f32 %v763, %v885
    %v887 = vpop.f32.mrf.mxu0
    %v888 = vadd.f32 %v765, %v887
    %v889 = vpop.f32.mrf.mxu0
    %v890 = vadd.f32 %v767, %v889
    %891 = vmatprep.mubr.bf16.mxu0 %v321
    %892 = vmatmul.mubr.bf16.gmra.mxu0 %v320
    %v893 = vpop.f32.mrf.mxu0
    %v894 = vadd.f32 %v771, %v893
    %v895 = vpop.f32.mrf.mxu0
    %v896 = vadd.f32 %v773, %v895
    %v897 = vpop.f32.mrf.mxu0
    %v898 = vadd.f32 %v775, %v897
    %v899 = vpop.f32.mrf.mxu0
    %v900 = vadd.f32 %v777, %v899
    %901 = vmatprep.mubr.bf16.mxu0 %v328
    %902 = vmatmul.mubr.bf16.gmra.mxu0 %v327
    %v903 = vpop.f32.mrf.mxu0
    %v904 = vadd.f32 %v781, %v903
    %v905 = vpop.f32.mrf.mxu0
    %v906 = vadd.f32 %v783, %v905
    %v907 = vpop.f32.mrf.mxu0
    %v908 = vadd.f32 %v785, %v907
    %v909 = vpop.f32.mrf.mxu0
    %v910 = vadd.f32 %v787, %v909
    %911 = vmatprep.mubr.bf16.mxu0 %v335
    %912 = vmatmul.mubr.bf16.gmra.mxu0 %v334
    %v913 = vpop.f32.mrf.mxu0
    %v914 = vadd.f32 %v791, %v913
    %v915 = vpop.f32.mrf.mxu0
    %v916 = vadd.f32 %v793, %v915
    %v917 = vpop.f32.mrf.mxu0
    %v918 = vadd.f32 %v795, %v917
    %v919 = vpop.f32.mrf.mxu0
    %v920 = vadd.f32 %v797, %v919
    %921 = vmatprep.mubr.bf16.mxu0 %v342
    %922 = vmatmul.mubr.bf16.gmra.mxu0 %v341
    %v923 = vpop.f32.mrf.mxu0
    %v924 = vadd.f32 %v801, %v923
    %v925 = vpop.f32.mrf.mxu0
    %v926 = vadd.f32 %v803, %v925
    %v927 = vpop.f32.mrf.mxu0
    %v928 = vadd.f32 %v805, %v927
    %v929 = vpop.f32.mrf.mxu0
    %v930 = vadd.f32 %v807, %v929
    %931 = vmatprep.mubr.bf16.mxu0 %v349
    %932 = vmatmul.mubr.bf16.gmra.mxu0 %v348
    %v933 = vpop.f32.mrf.mxu0
    %v934 = vadd.f32 %v811, %v933
    %v935 = vpop.f32.mrf.mxu0
    %v936 = vadd.f32 %v813, %v935
    %v937 = vpop.f32.mrf.mxu0
    %v938 = vadd.f32 %v815, %v937
    %v939 = vpop.f32.mrf.mxu0
    %v940 = vadd.f32 %v817, %v939
    %941 = vmatprep.mubr.bf16.mxu0 %v356
    %942 = vmatmul.mubr.bf16.gmra.mxu0 %v355
    %v943 = vpop.f32.mrf.mxu0
    %v944 = vadd.f32 %v821, %v943
    %v945 = vpop.f32.mrf.mxu0
    %v946 = vadd.f32 %v823, %v945
    %v947 = vpop.f32.mrf.mxu0
    %v948 = vadd.f32 %v825, %v947
    %v949 = vpop.f32.mrf.mxu0
    %v950 = vadd.f32 %v827, %v949
    %951 = vmatprep.mubr.bf16.mxu0 %v363
    %952 = vmatmul.mubr.bf16.gmra.mxu0 %v362
    %v953 = vpop.f32.mrf.mxu0
    %v954 = vadd.f32 %v831, %v953
    %v955 = vpop.f32.mrf.mxu0
    %v956 = vadd.f32 %v833, %v955
    %v957 = vpop.f32.mrf.mxu0
    %v958 = vadd.f32 %v835, %v957
    %v959 = vpop.f32.mrf.mxu0
    %v960 = vadd.f32 %v837, %v959
    %961 = vmatprep.mubr.bf16.mxu0 %v370
    %962 = vmatmul.mubr.bf16.gmra.mxu0 %v369
    %v963 = vpop.f32.mrf.mxu0
    %v964 = vadd.f32 %v841, %v963
    %v965 = vpop.f32.mrf.mxu0
    %v966 = vadd.f32 %v843, %v965
    %v967 = vpop.f32.mrf.mxu0
    %v968 = vadd.f32 %v845, %v967
    %v969 = vpop.f32.mrf.mxu0
    %v970 = vadd.f32 %v847, %v969
    %971 = vdwg.mxu0
    %972 = vmatprep.subr.bf16.mxu0 %v669
    %973 = vmatpush1.bf16.msra.mxu0 %v668
    %974 = vmatprep.subr.bf16.mxu0 %v667
    %975 = vmatpush1.bf16.msra.mxu0 %v666
    %976 = vmatprep.subr.bf16.mxu0 %v665
    %977 = vmatpush1.bf16.msra.mxu0 %v664
    %978 = vmatprep.subr.bf16.mxu0 %v663
    %979 = vmatpush1.bf16.msra.mxu0 %v662
    %980 = vmatprep.subr.bf16.mxu0 %v661
    %981 = vmatpush1.bf16.msra.mxu0 %v660
    %982 = vmatprep.subr.bf16.mxu0 %v659
    %983 = vmatpush1.bf16.msra.mxu0 %v658
    %984 = vmatprep.subr.bf16.mxu0 %v657
    %985 = vmatpush1.bf16.msra.mxu0 %v656
    %986 = vmatprep.subr.bf16.mxu0 %v655
    %987 = vmatpush1.bf16.msra.mxu0 %v654
    %988 = vmatprep.subr.bf16.mxu0 %v685
    %989 = vmatpush2.bf16.msra.mxu0 %v684
    %990 = vmatprep.subr.bf16.mxu0 %v683
    %991 = vmatpush2.bf16.msra.mxu0 %v682
    %992 = vmatprep.subr.bf16.mxu0 %v681
    %993 = vmatpush2.bf16.msra.mxu0 %v680
    %994 = vmatprep.subr.bf16.mxu0 %v679
    %995 = vmatpush2.bf16.msra.mxu0 %v678
    %996 = vmatprep.subr.bf16.mxu0 %v677
    %997 = vmatpush2.bf16.msra.mxu0 %v676
    %998 = vmatprep.subr.bf16.mxu0 %v675
    %999 = vmatpush2.bf16.msra.mxu0 %v674
    %1000 = vmatprep.subr.bf16.mxu0 %v673
    %1001 = vmatpush2.bf16.msra.mxu0 %v672
    %1002 = vmatprep.subr.bf16.mxu0 %v671
    %1003 = vmatpush2.bf16.msra.mxu0 %v670
    %1004 = vmatprep.mubr.bf16.mxu0 %v316
    %1005 = vmatmul.mubr.bf16.gmra.mxu0 %v315
    %v1006 = vpop.f32.mrf.mxu0
    %v1007 = vadd.f32 %v884, %v1006
    %v1008 = vpop.f32.mrf.mxu0
    %v1009 = vadd.f32 %v886, %v1008
    %v1010 = vpop.f32.mrf.mxu0
    %v1011 = vadd.f32 %v888, %v1010
    %v1012 = vpop.f32.mrf.mxu0
    %v1013 = vadd.f32 %v890, %v1012
    %1014 = vmatprep.mubr.bf16.mxu0 %v323
    %1015 = vmatmul.mubr.bf16.gmra.mxu0 %v322
    %v1016 = vpop.f32.mrf.mxu0
    %v1017 = vadd.f32 %v894, %v1016
    %v1018 = vpop.f32.mrf.mxu0
    %v1019 = vadd.f32 %v896, %v1018
    %v1020 = vpop.f32.mrf.mxu0
    %v1021 = vadd.f32 %v898, %v1020
    %v1022 = vpop.f32.mrf.mxu0
    %v1023 = vadd.f32 %v900, %v1022
    %1024 = vmatprep.mubr.bf16.mxu0 %v330
    %1025 = vmatmul.mubr.bf16.gmra.mxu0 %v329
    %v1026 = vpop.f32.mrf.mxu0
    %v1027 = vadd.f32 %v904, %v1026
    %v1028 = vpop.f32.mrf.mxu0
    %v1029 = vadd.f32 %v906, %v1028
    %v1030 = vpop.f32.mrf.mxu0
    %v1031 = vadd.f32 %v908, %v1030
    %v1032 = vpop.f32.mrf.mxu0
    %v1033 = vadd.f32 %v910, %v1032
    %1034 = vmatprep.mubr.bf16.mxu0 %v337
    %1035 = vmatmul.mubr.bf16.gmra.mxu0 %v336
    %v1036 = vpop.f32.mrf.mxu0
    %v1037 = vadd.f32 %v914, %v1036
    %v1038 = vpop.f32.mrf.mxu0
    %v1039 = vadd.f32 %v916, %v1038
    %v1040 = vpop.f32.mrf.mxu0
    %v1041 = vadd.f32 %v918, %v1040
    %v1042 = vpop.f32.mrf.mxu0
    %v1043 = vadd.f32 %v920, %v1042
    %1044 = vmatprep.mubr.bf16.mxu0 %v344
    %1045 = vmatmul.mubr.bf16.gmra.mxu0 %v343
    %v1046 = vpop.f32.mrf.mxu0
    %v1047 = vadd.f32 %v924, %v1046
    %v1048 = vpop.f32.mrf.mxu0
    %v1049 = vadd.f32 %v926, %v1048
    %v1050 = vpop.f32.mrf.mxu0
    %v1051 = vadd.f32 %v928, %v1050
    %v1052 = vpop.f32.mrf.mxu0
    %v1053 = vadd.f32 %v930, %v1052
    %1054 = vmatprep.mubr.bf16.mxu0 %v351
    %1055 = vmatmul.mubr.bf16.gmra.mxu0 %v350
    %v1056 = vpop.f32.mrf.mxu0
    %v1057 = vadd.f32 %v934, %v1056
    %v1058 = vpop.f32.mrf.mxu0
    %v1059 = vadd.f32 %v936, %v1058
    %v1060 = vpop.f32.mrf.mxu0
    %v1061 = vadd.f32 %v938, %v1060
    %v1062 = vpop.f32.mrf.mxu0
    %v1063 = vadd.f32 %v940, %v1062
    %1064 = vmatprep.mubr.bf16.mxu0 %v358
    %1065 = vmatmul.mubr.bf16.gmra.mxu0 %v357
    %v1066 = vpop.f32.mrf.mxu0
    %v1067 = vadd.f32 %v944, %v1066
    %v1068 = vpop.f32.mrf.mxu0
    %v1069 = vadd.f32 %v946, %v1068
    %v1070 = vpop.f32.mrf.mxu0
    %v1071 = vadd.f32 %v948, %v1070
    %v1072 = vpop.f32.mrf.mxu0
    %v1073 = vadd.f32 %v950, %v1072
    %1074 = vmatprep.mubr.bf16.mxu0 %v365
    %1075 = vmatmul.mubr.bf16.gmra.mxu0 %v364
    %v1076 = vpop.f32.mrf.mxu0
    %v1077 = vadd.f32 %v954, %v1076
    %v1078 = vpop.f32.mrf.mxu0
    %v1079 = vadd.f32 %v956, %v1078
    %v1080 = vpop.f32.mrf.mxu0
    %v1081 = vadd.f32 %v958, %v1080
    %v1082 = vpop.f32.mrf.mxu0
    %v1083 = vadd.f32 %v960, %v1082
    %1084 = vmatprep.mubr.bf16.mxu0 %v372
    %1085 = vmatmul.mubr.bf16.gmra.mxu0 %v371
    %v1086 = vpop.f32.mrf.mxu0
    %v1087 = vadd.f32 %v964, %v1086
    %v1088 = vpop.f32.mrf.mxu0
    %v1089 = vadd.f32 %v966, %v1088
    %v1090 = vpop.f32.mrf.mxu0
    %v1091 = vadd.f32 %v968, %v1090
    %v1092 = vpop.f32.mrf.mxu0
    %v1093 = vadd.f32 %v970, %v1092
    %1094 = vdwg.mxu0
    %1095 = vmatprep.subr.bf16.mxu0 0
    %1096 = vmatpush1.bf16.msra.mxu0 0
    %1097 = vmatprep.subr.bf16.mxu0 0
    %1098 = vmatpush1.bf16.msra.mxu0 0
    %1099 = vmatprep.subr.bf16.mxu0 %v697
    %1100 = vmatpush1.bf16.msra.mxu0 %v696
    %1101 = vmatprep.subr.bf16.mxu0 %v695
    %1102 = vmatpush1.bf16.msra.mxu0 %v694
    %1103 = vmatprep.subr.bf16.mxu0 %v693
    %1104 = vmatpush1.bf16.msra.mxu0 %v692
    %1105 = vmatprep.subr.bf16.mxu0 %v691
    %1106 = vmatpush1.bf16.msra.mxu0 %v690
    %1107 = vmatprep.subr.bf16.mxu0 %v689
    %1108 = vmatpush1.bf16.msra.mxu0 %v688
    %1109 = vmatprep.subr.bf16.mxu0 %v687
    %1110 = vmatpush1.bf16.msra.mxu0 %v686
    %1111 = vmatprep.subr.bf16.mxu0 0
    %1112 = vmatpush2.bf16.msra.mxu0 0
    %1113 = vmatprep.subr.bf16.mxu0 0
    %1114 = vmatpush2.bf16.msra.mxu0 0
    %1115 = vmatprep.subr.bf16.mxu0 0
    %1116 = vmatpush2.bf16.msra.mxu0 0
    %1117 = vmatprep.subr.bf16.mxu0 0
    %1118 = vmatpush2.bf16.msra.mxu0 0
    %1119 = vmatprep.subr.bf16.mxu0 0
    %1120 = vmatpush2.bf16.msra.mxu0 0
    %1121 = vmatprep.subr.bf16.mxu0 0
    %1122 = vmatpush2.bf16.msra.mxu0 0
    %1123 = vmatprep.subr.bf16.mxu0 0
    %1124 = vmatpush2.bf16.msra.mxu0 0
    %1125 = vmatprep.subr.bf16.mxu0 0
    %1126 = vmatpush2.bf16.msra.mxu0 0
    %1127 = vmatprep.mubr.bf16.mxu0 0
    %1128 = vmatmul.mubr.bf16.gmra.mxu0 %v700
    %v1129 = vpop.f32.mrf.mxu0
    %v1130 = vadd.f32 %v1007, %v1129
    %v1131 = vpop.f32.mrf.mxu0
    %v1132 = vadd.f32 %v1009, %v1131
    %v1133 = vpop.f32.mrf.mxu0
    %v1134 = vadd.f32 %v1011, %v1133
    %v1135 = vpop.f32.mrf.mxu0
    %v1136 = vadd.f32 %v1013, %v1135
    %1137 = vmatprep.mubr.bf16.mxu0 0
    %1138 = vmatmul.mubr.bf16.gmra.mxu0 %v703
    %v1139 = vpop.f32.mrf.mxu0
    %v1140 = vadd.f32 %v1017, %v1139
    %v1141 = vpop.f32.mrf.mxu0
    %v1142 = vadd.f32 %v1019, %v1141
    %v1143 = vpop.f32.mrf.mxu0
    %v1144 = vadd.f32 %v1021, %v1143
    %v1145 = vpop.f32.mrf.mxu0
    %v1146 = vadd.f32 %v1023, %v1145
    %1147 = vmatprep.mubr.bf16.mxu0 0
    %1148 = vmatmul.mubr.bf16.gmra.mxu0 %v706
    %v1149 = vpop.f32.mrf.mxu0
    %v1150 = vadd.f32 %v1027, %v1149
    %v1151 = vpop.f32.mrf.mxu0
    %v1152 = vadd.f32 %v1029, %v1151
    %v1153 = vpop.f32.mrf.mxu0
    %v1154 = vadd.f32 %v1031, %v1153
    %v1155 = vpop.f32.mrf.mxu0
    %v1156 = vadd.f32 %v1033, %v1155
    %1157 = vmatprep.mubr.bf16.mxu0 0
    %1158 = vmatmul.mubr.bf16.gmra.mxu0 %v709
    %v1159 = vpop.f32.mrf.mxu0
    %v1160 = vadd.f32 %v1037, %v1159
    %v1161 = vpop.f32.mrf.mxu0
    %v1162 = vadd.f32 %v1039, %v1161
    %v1163 = vpop.f32.mrf.mxu0
    %v1164 = vadd.f32 %v1041, %v1163
    %v1165 = vpop.f32.mrf.mxu0
    %v1166 = vadd.f32 %v1043, %v1165
    %1167 = vmatprep.mubr.bf16.mxu0 0
    %1168 = vmatmul.mubr.bf16.gmra.mxu0 %v712
    %v1169 = vpop.f32.mrf.mxu0
    %v1170 = vadd.f32 %v1047, %v1169
    %v1171 = vpop.f32.mrf.mxu0
    %v1172 = vadd.f32 %v1049, %v1171
    %v1173 = vpop.f32.mrf.mxu0
    %v1174 = vadd.f32 %v1051, %v1173
    %v1175 = vpop.f32.mrf.mxu0
    %v1176 = vadd.f32 %v1053, %v1175
    %1177 = vmatprep.mubr.bf16.mxu0 0
    %1178 = vmatmul.mubr.bf16.gmra.mxu0 %v715
    %v1179 = vpop.f32.mrf.mxu0
    %v1180 = vadd.f32 %v1057, %v1179
    %v1181 = vpop.f32.mrf.mxu0
    %v1182 = vadd.f32 %v1059, %v1181
    %v1183 = vpop.f32.mrf.mxu0
    %v1184 = vadd.f32 %v1061, %v1183
    %v1185 = vpop.f32.mrf.mxu0
    %v1186 = vadd.f32 %v1063, %v1185
    %1187 = vmatprep.mubr.bf16.mxu0 0
    %1188 = vmatmul.mubr.bf16.gmra.mxu0 %v718
    %v1189 = vpop.f32.mrf.mxu0
    %v1190 = vadd.f32 %v1067, %v1189
    %v1191 = vpop.f32.mrf.mxu0
    %v1192 = vadd.f32 %v1069, %v1191
    %v1193 = vpop.f32.mrf.mxu0
    %v1194 = vadd.f32 %v1071, %v1193
    %v1195 = vpop.f32.mrf.mxu0
    %v1196 = vadd.f32 %v1073, %v1195
    %1197 = vmatprep.mubr.bf16.mxu0 0
    %1198 = vmatmul.mubr.bf16.gmra.mxu0 %v721
    %v1199 = vpop.f32.mrf.mxu0
    %v1200 = vadd.f32 %v1077, %v1199
    %v1201 = vpop.f32.mrf.mxu0
    %v1202 = vadd.f32 %v1079, %v1201
    %v1203 = vpop.f32.mrf.mxu0
    %v1204 = vadd.f32 %v1081, %v1203
    %v1205 = vpop.f32.mrf.mxu0
    %v1206 = vadd.f32 %v1083, %v1205
    %1207 = vmatprep.mubr.bf16.mxu0 0
    %1208 = vmatmul.mubr.bf16.gmra.mxu0 %v724
    %v1209 = vpop.f32.mrf.mxu0
    %v1210 = vadd.f32 %v1087, %v1209
    %v1211 = vpop.f32.mrf.mxu0
    %v1212 = vadd.f32 %v1089, %v1211
    %v1213 = vpop.f32.mrf.mxu0
    %v1214 = vadd.f32 %v1091, %v1213
    %v1215 = vpop.f32.mrf.mxu0
    %v1216 = vadd.f32 %v1093, %v1215
    %1217 = vdwg.mxu0
    %1218 = vst [vmem:[#allocation2] sm:$0xff] %v1130
    %vm1219 = vcmask 556032
    %1220 = vst.msk [vmem:[#allocation2 + $0x8] sm:$0xff] %vm1219, %v1132
    %1221 = vst [vmem:[#allocation2 + $0x10] sm:$0xff] %v1134
    %1222 = vst.msk [vmem:[#allocation2 + $0x18] sm:$0xff] %vm1219, %v1136
    %1223 = vst [vmem:[#allocation2 + $0x20] sm:$0xff] %v1140
    %1224 = vst.msk [vmem:[#allocation2 + $0x28] sm:$0xff] %vm1219, %v1142
    %1225 = vst [vmem:[#allocation2 + $0x30] sm:$0xff] %v1144
    %1226 = vst.msk [vmem:[#allocation2 + $0x38] sm:$0xff] %vm1219, %v1146
    %1227 = vst [vmem:[#allocation2 + $0x40] sm:$0xff] %v1150
    %1228 = vst.msk [vmem:[#allocation2 + $0x48] sm:$0xff] %vm1219, %v1152
    %1229 = vst [vmem:[#allocation2 + $0x50] sm:$0xff] %v1154
    %1230 = vst.msk [vmem:[#allocation2 + $0x58] sm:$0xff] %vm1219, %v1156
    %1231 = vst [vmem:[#allocation2 + $0x60] sm:$0xff] %v1160
    %1232 = vst.msk [vmem:[#allocation2 + $0x68] sm:$0xff] %vm1219, %v1162
    %1233 = vst [vmem:[#allocation2 + $0x70] sm:$0xff] %v1164
    %1234 = vst.msk [vmem:[#allocation2 + $0x78] sm:$0xff] %vm1219, %v1166
    %1235 = vst [vmem:[#allocation2 + $0x80] sm:$0xff] %v1170
    %1236 = vst.msk [vmem:[#allocation2 + $0x88] sm:$0xff] %vm1219, %v1172
    %1237 = vst [vmem:[#allocation2 + $0x90] sm:$0xff] %v1174
    %1238 = vst.msk [vmem:[#allocation2 + $0x98] sm:$0xff] %vm1219, %v1176
    %1239 = vst [vmem:[#allocation2 + $0xa0] sm:$0xff] %v1180
    %1240 = vst.msk [vmem:[#allocation2 + $0xa8] sm:$0xff] %vm1219, %v1182
    %1241 = vst [vmem:[#allocation2 + $0xb0] sm:$0xff] %v1184
    %1242 = vst.msk [vmem:[#allocation2 + $0xb8] sm:$0xff] %vm1219, %v1186
    %1243 = vst [vmem:[#allocation2 + $0xc0] sm:$0xff] %v1190
    %1244 = vst.msk [vmem:[#allocation2 + $0xc8] sm:$0xff] %vm1219, %v1192
    %1245 = vst [vmem:[#allocation2 + $0xd0] sm:$0xff] %v1194
    %1246 = vst.msk [vmem:[#allocation2 + $0xd8] sm:$0xff] %vm1219, %v1196
    %1247 = vst [vmem:[#allocation2 + $0xe0] sm:$0xff] %v1200
    %1248 = vst.msk [vmem:[#allocation2 + $0xe8] sm:$0xff] %vm1219, %v1202
    %1249 = vst [vmem:[#allocation2 + $0xf0] sm:$0xff] %v1204
    %1250 = vst.msk [vmem:[#allocation2 + $0xf8] sm:$0xff] %vm1219, %v1206
    %1251 = vst [vmem:[#allocation2 + $0x100] sm:$0xff] %v1210
    %1252 = vst.msk [vmem:[#allocation2 + $0x108] sm:$0xff] %vm1219, %v1212
    %1253 = vst [vmem:[#allocation2 + $0x110] sm:$0xff] %v1214
    %1254 = vst.msk [vmem:[#allocation2 + $0x118] sm:$0xff] %vm1219, %v1216
    // Predicated region
    $region14: #{tpu_custom_call.1} parent=1 // pred_check
      _
    $region15: #{tpu_custom_call.1} parent=1 // pred_check_branch
      %1256 = sbr.rel (0) target = $region17
    $region16: #{tpu_custom_call.1} parent=1 // pred_region
      %s1258 = ssub.s32 4608, 4608
      %1259 = vsyncadd [#allocation3], %s1258
      %s1260 = sshll.u32 [#allocation2], 4
      %s1261 = int_to_ptr.vmem [resolvable:$true] %s1260
      %1266 = dma.vmem_to_hbm [thread:$0]  %s1261, 4608, %s3, [#allocation3], 256, 256, 16
    $region17: #{tpu_custom_call.1} parent=1 // pred_fallthru
      _
    // Predicated region
    $region18: #{tpu_custom_call.1} parent=1 // pred_check
      _
    $region19: #{tpu_custom_call.1} parent=1 // pred_check_branch
      %1268 = sbr.rel (0) target = $region21
    $region20: #{tpu_custom_call.1} parent=1 // pred_region
      %1269 = dma.done [#allocation3], 4608
    $region21: #{tpu_custom_call.1} parent=1 // pred_fallthru
      _
    %1270 = vsyncpa [#allocation3], 1

</llo_original>
